<compile_context>
chip_gen: v7x
topology: tpu7x:2x2x1
jax: 0.10.0
libtpu: 0.0.40
codegen_flags: <defaults>
</compile_context>

<pallas_src>
import functools

import jax
import jax.numpy as jnp
import numpy as np
from jax.experimental import pallas as pl
from jax.experimental.pallas import tpu as pltpu


def _round_up(x: int, m: int) -> int:
    return ((x + m - 1) // m) * m


def _matmul_kernel(x_ref, w_ref, o_ref, acc_ref):
    """One (tm, tn) output tile; K (grid axis 2) is the reduction axis."""
    k = pl.program_id(2)

    @pl.when(k == 0)
    def _init():
        acc_ref[...] = jnp.zeros_like(acc_ref)

    # bf16 x bf16 -> f32 accumulate on the MXU; weight already (tk, tn),
    # so no in-kernel transpose / relayout.
    acc_ref[...] += jnp.dot(x_ref[...], w_ref[...],
                            preferred_element_type=jnp.float32)

    @pl.when(k == pl.num_programs(2) - 1)
    def _finalize():
        o_ref[...] = acc_ref[...].astype(o_ref.dtype)


@functools.partial(jax.jit, static_argnames=("tm", "tn", "tk"))
def mlp_forward(x, weight, *, tm=None, tn=None, tk=None):
    """x: (B, IN) f32; weight: (OUT, IN) f32 (PyTorch nn.Linear layout).

    Returns (B, OUT) f32 = x @ weight.T, computed with bf16 operands and
    f32 accumulation on the MXU.
    """
    B, IN = x.shape
    OUT, IN2 = weight.shape
    assert IN == IN2

    # Pre-transpose the parameter once outside the kernel: (IN, OUT).
    # (For a real model this would be stored transposed at init time.)
    w_t = weight.T

    # Lane-dense tile sizes, adapted down for small shapes:
    #   - tm: sublane axis of output, multiple of 8
    #   - tn: lane axis of output, multiple of 128 (256 preferred when big)
    #   - tk: contraction, multiple of 128 (256 preferred when big)
    if tm is None:
        tm = min(128, _round_up(B, 8))
    if tn is None:
        tn = min(256, _round_up(OUT, 128))
    if tk is None:
        tk = min(256, _round_up(IN, 128))

    B_p = _round_up(B, tm)
    OUT_p = _round_up(OUT, tn)
    IN_p = _round_up(IN, tk)

    # Zero-pad to tile multiples (zeros in K contribute nothing; padded
    # rows/cols of the output are sliced off below). Cast to bf16 for the MXU.
    x_bf = jnp.pad(x, ((0, B_p - B), (0, IN_p - IN))).astype(jnp.bfloat16)
    w_bf = jnp.pad(w_t, ((0, IN_p - IN), (0, OUT_p - OUT))).astype(jnp.bfloat16)

    grid = (B_p // tm, OUT_p // tn, IN_p // tk)

    flops = 2 * B_p * IN_p * OUT_p
    bytes_accessed = (B_p * IN_p * 2          # x (bf16)
                      + IN_p * OUT_p * 2      # w (bf16)
                      + B_p * OUT_p * 4)      # out (f32)

    out_padded = pl.pallas_call(
        _matmul_kernel,
        out_shape=jax.ShapeDtypeStruct((B_p, OUT_p), x.dtype),
        grid_spec=pltpu.PrefetchScalarGridSpec(
            num_scalar_prefetch=0,
            grid=grid,
            in_specs=[
                pl.BlockSpec((tm, tk), lambda i, j, k: (i, k)),  # x tile
                pl.BlockSpec((tk, tn), lambda i, j, k: (k, j)),  # w tile
            ],
            out_specs=pl.BlockSpec((tm, tn), lambda i, j, k: (i, j)),
            scratch_shapes=[pltpu.VMEM((tm, tn), jnp.float32)],
        ),
        compiler_params=pltpu.CompilerParams(
            dimension_semantics=("parallel", "parallel", "arbitrary"),
            vmem_limit_bytes=32 * 1024 * 1024,
        ),
        cost_estimate=pl.CostEstimate(
            flops=flops, transcendentals=0, bytes_accessed=bytes_accessed),
    )(x_bf, w_bf)

    return out_padded[:B, :OUT]


def xavier_uniform(key, out_features, in_features, dtype=jnp.float32):
    # Matches torch.nn.init.xavier_uniform_ (gain=1):
    # bound = sqrt(6 / (fan_in + fan_out)), uniform in [-bound, bound].
    bound = float(np.sqrt(6.0 / (in_features + out_features)))
    return jax.random.uniform(
        key, (out_features, in_features), dtype=dtype,
        minval=-bound, maxval=bound)


if __name__ == "__main__":
    key = jax.random.PRNGKey(0)
    k_x, k_w = jax.random.split(key)

    batch = 8
    input_size = 32
    output_size = 16

    x = jax.random.normal(k_x, (batch, input_size), dtype=jnp.float32)
    weight = xavier_uniform(k_w, output_size, input_size)

    y = mlp_forward(x, weight)
    jax.block_until_ready(y)

    # Reference on CPU/numpy with the same bf16-rounded operands
    # (kernel uses bf16 inputs + f32 accumulation).
    x_bf = np.asarray(x.astype(jnp.bfloat16).astype(jnp.float32))
    w_bf = np.asarray(weight.astype(jnp.bfloat16).astype(jnp.float32))
    y_ref = x_bf @ w_bf.T
    np.testing.assert_allclose(np.asarray(y), y_ref, rtol=1e-4, atol=1e-4)
    print("KERNEL_OK")
</pallas_src>

<mosaic_0001>
module attributes {stable_mosaic.version = 11 : i64} {
  func.func @_matmul_kernel(%arg0: i32, %arg1: i32, %arg2: i32, %arg3: memref<8x128xbf16, #tpu.memory_space<vmem>>, %arg4: memref<128x128xbf16, #tpu.memory_space<vmem>>, %arg5: memref<8x128xf32, #tpu.memory_space<vmem>>, %arg6: memref<8x128xf32, #tpu.memory_space<vmem>>) attributes {dimension_semantics = [#tpu.dimension_semantics<parallel>, #tpu.dimension_semantics<parallel>, #tpu.dimension_semantics<arbitrary>], iteration_bounds = array<i64: 1, 1, 1>, scalar_prefetch = 0 : i64, scratch_operands = 1 : i64, tpu.core_type = #tpu.core_type<tc>, window_params = [{transform_indices = @transform_0, window_bounds = array<i64: 8, 128>}, {transform_indices = @transform_1, window_bounds = array<i64: 128, 128>}, {transform_indices = @transform_2, window_bounds = array<i64: 8, 128>}]} {
    %c0_i32 = arith.constant 0 : i32
    %0 = arith.cmpi eq, %arg2, %c0_i32 : i32
    %1 = arith.extui %0 : i1 to i32
    %c0_i32_0 = arith.constant 0 : i32
    %2 = arith.cmpi ne, %1, %c0_i32_0 : i32
    scf.if %2 {
      %cst_10 = arith.constant 0.000000e+00 : f32
      %12 = vector.broadcast %cst_10 : f32 to vector<8x128xf32>
      %c0_11 = arith.constant 0 : index
      %c0_12 = arith.constant 0 : index
      %13 = vector.load %arg6[%c0_11, %c0_12] : memref<8x128xf32, #tpu.memory_space<vmem>>, vector<8x128xf32>
      tpu.vector_store %arg6[%c0_11, %c0_12], %12 {strides = array<i32>} : memref<8x128xf32, #tpu.memory_space<vmem>>, vector<8x128xf32>,
    } else {
    }
    %c0 = arith.constant 0 : index
    %c0_1 = arith.constant 0 : index
    %3 = vector.load %arg6[%c0, %c0_1] : memref<8x128xf32, #tpu.memory_space<vmem>>, vector<8x128xf32>
    %c0_2 = arith.constant 0 : index
    %c0_3 = arith.constant 0 : index
    %4 = vector.load %arg3[%c0_2, %c0_3] : memref<8x128xbf16, #tpu.memory_space<vmem>>, vector<8x128xbf16>
    %c0_4 = arith.constant 0 : index
    %c0_5 = arith.constant 0 : index
    %5 = vector.load %arg4[%c0_4, %c0_5] : memref<128x128xbf16, #tpu.memory_space<vmem>>, vector<128x128xbf16>
    %cst = arith.constant dense<0.000000e+00> : vector<8x128xf32>
    %6 = tpu.matmul %4, %5, %cst {dimension_numbers = #tpu.dot_dimension_numbers<[1], [0], [0], [1], [0, 0, 1, 1], [], []>} : vector<8x128xbf16>, vector<128x128xbf16>, vector<8x128xf32> -> vector<8x128xf32>
    %7 = arith.addf %3, %6 : vector<8x128xf32>
    %c0_6 = arith.constant 0 : index
    %c0_7 = arith.constant 0 : index
    %8 = vector.load %arg6[%c0_6, %c0_7] : memref<8x128xf32, #tpu.memory_space<vmem>>, vector<8x128xf32>
    tpu.vector_store %arg6[%c0_6, %c0_7], %7 {strides = array<i32>} : memref<8x128xf32, #tpu.memory_space<vmem>>, vector<8x128xf32>,
    %c0_i32_8 = arith.constant 0 : i32
    %9 = arith.cmpi eq, %arg2, %c0_i32_8 : i32
    %10 = arith.extui %9 : i1 to i32
    %c0_i32_9 = arith.constant 0 : i32
    %11 = arith.cmpi ne, %10, %c0_i32_9 : i32
    scf.if %11 {
      %c0_10 = arith.constant 0 : index
      %c0_11 = arith.constant 0 : index
      %12 = vector.load %arg6[%c0_10, %c0_11] : memref<8x128xf32, #tpu.memory_space<vmem>>, vector<8x128xf32>
      %c0_12 = arith.constant 0 : index
      %c0_13 = arith.constant 0 : index
      %13 = vector.load %arg5[%c0_12, %c0_13] : memref<8x128xf32, #tpu.memory_space<vmem>>, vector<8x128xf32>
      tpu.vector_store %arg5[%c0_12, %c0_13], %12 {strides = array<i32>} : memref<8x128xf32, #tpu.memory_space<vmem>>, vector<8x128xf32>,
    } else {
    }
    return
  }
  func.func @transform_0(%arg0: i32, %arg1: i32, %arg2: i32) -> (i32, i32) {
    %c0_i32 = arith.constant 0 : i32
    return %arg0, %arg2 : i32, i32
  }
  func.func @transform_1(%arg0: i32, %arg1: i32, %arg2: i32) -> (i32, i32) {
    %c0_i32 = arith.constant 0 : i32
    return %arg2, %arg1 : i32, i32
  }
  func.func @transform_2(%arg0: i32, %arg1: i32, %arg2: i32) -> (i32, i32) {
    %c0_i32 = arith.constant 0 : i32
    return %arg0, %arg1 : i32, i32
  }
}

</mosaic_0001>

<llo_original>
// kernel: mlp_forward.1
$region0: #{mlp_forward.1}
  #allocation0 [shape = 'u32[]', space=smem, size = 0x4, offset = 0x4, fixed_abs, tag = 'smem constant byte address 0x4 - core index']
  #allocation1 [shape = 'u32[144,128]{1,0:T(1,128)}', space=vmem, size = 0x12000, scoped, tag = 'internal scratch']
  #allocation2 [shape = 'f32[8,128]{1,0:T(8,128)}', space=vmem, size = 0x1000, scoped, tag = 'scratch operand']
  %s0 = inlined_call_operand.vmem [shape: bf16[8,128], index: 0, kind: input, shape index: {}]
  %s1 = inlined_call_operand.vmem [shape: bf16[128,128], index: 1, kind: input, shape index: {}]
  %s2 = inlined_call_operand.hbm [shape: f32[8,128], index: 2, kind: output, shape index: {}]
  %s3 = sld [smem:[#allocation0]]
  $region26: #{mlp_forward.1} parent=0
    _
  %s5 = ssub.s32 1, %s3
  %s6 = scalar_select 0, %s5, %s3
  $region1: #{mlp_forward.1} parent=0
    #allocation3 [shape = 'u8[4096]{0}', space=vmem, size = 0x1000, scoped, tag = 'output window, operand 0, single buffered']
    #allocation4 [shape = 's32[1]{0}', space=sflag, size = 0x4, scoped, tag = 'scoped memory for mlp_forward.1']
    %7 = vsyncpa [#allocation4], 0
    // Predicated region
    $region2: #{mlp_forward.1} parent=1 // pred_check
      _
    $region3: #{mlp_forward.1} parent=1 // pred_check_branch
      %9 = sbr.rel (0) target = $region5
    $region4: #{mlp_forward.1} parent=1 // pred_region
      _
    $region5: #{mlp_forward.1} parent=1 // pred_fallthru
      _
    // Predicated region
    $region6: #{mlp_forward.1} parent=1 // pred_check
      _
    $region7: #{mlp_forward.1} parent=1 // pred_check_branch
      %11 = sbr.rel (0) target = $region9
    $region8: #{mlp_forward.1} parent=1 // pred_region
      _
    $region9: #{mlp_forward.1} parent=1 // pred_fallthru
      _
    %p13 = scmp.eq.s32.totalorder 0, 0
    // Predicated region
    $region10: #{mlp_forward.1} parent=1 // pred_check
      %p14 = pneg %p13
    $region11: #{mlp_forward.1} parent=1 // pred_check_branch
      %16 = sbr.rel (%p14) target = $region13
    $region12: #{mlp_forward.1} parent=1 // pred_region
      %17 = vst [vmem:[#allocation2] sm:$0xff] 0.0
    $region13: #{mlp_forward.1} parent=1 // pred_fallthru
      _
    %v18 = vld [vmem:[#allocation2] sm:$0xff]
    %v19 = vld [vmem:[%s0] sm:$0xf]
    %v20 = vld [vmem:[%s1] sm:$0xf]
    %v21 = vld [vmem:[%s1 + $0x4] sm:$0xf]
    %v22 = vld [vmem:[%s1 + $0x8] sm:$0xf]
    %v23 = vld [vmem:[%s1 + $0xc] sm:$0xf]
    %v24 = vld [vmem:[%s1 + $0x10] sm:$0xf]
    %v25 = vld [vmem:[%s1 + $0x14] sm:$0xf]
    %v26 = vld [vmem:[%s1 + $0x18] sm:$0xf]
    %v27 = vld [vmem:[%s1 + $0x1c] sm:$0xf]
    %v28 = vld [vmem:[%s1 + $0x20] sm:$0xf]
    %v29 = vld [vmem:[%s1 + $0x24] sm:$0xf]
    %v30 = vld [vmem:[%s1 + $0x28] sm:$0xf]
    %v31 = vld [vmem:[%s1 + $0x2c] sm:$0xf]
    %v32 = vld [vmem:[%s1 + $0x30] sm:$0xf]
    %v33 = vld [vmem:[%s1 + $0x34] sm:$0xf]
    %v34 = vld [vmem:[%s1 + $0x38] sm:$0xf]
    %v35 = vld [vmem:[%s1 + $0x3c] sm:$0xf]
    %v52 = vunpack.c.l.b16 %v20
    %v53 = vunpack.c.l.b16 %v21
    %v54 = vunpack.c.l.b16 %v22
    %v55 = vunpack.c.l.b16 %v23
    %v56 = vunpack.c.l.b16 %v24
    %v57 = vunpack.c.l.b16 %v25
    %v58 = vunpack.c.l.b16 %v26
    %v59 = vunpack.c.l.b16 %v27
    %v60 = vunpack.c.l.b16 %v28
    %v61 = vunpack.c.l.b16 %v29
    %v62 = vunpack.c.l.b16 %v30
    %v63 = vunpack.c.l.b16 %v31
    %v64 = vunpack.c.l.b16 %v32
    %v65 = vunpack.c.l.b16 %v33
    %v66 = vunpack.c.l.b16 %v34
    %v67 = vunpack.c.l.b16 %v35
    %v68 = vpack.c.b16 %v53, %v52
    %v69 = vpack.c.b16 %v55, %v54
    %v70 = vpack.c.b16 %v57, %v56
    %v71 = vpack.c.b16 %v59, %v58
    %v72 = vpack.c.b16 %v61, %v60
    %v73 = vpack.c.b16 %v63, %v62
    %v74 = vpack.c.b16 %v65, %v64
    %v75 = vpack.c.b16 %v67, %v66
    %84 = vmatprep.subr.bf16.mxu0 0
    %85 = vmatpush1.bf16.msra.mxu0 %v68
    %86 = vmatprep.subr.bf16.mxu0 0
    %87 = vmatpush1.bf16.msra.mxu0 %v69
    %88 = vmatprep.subr.bf16.mxu0 0
    %89 = vmatpush1.bf16.msra.mxu0 %v70
    %90 = vmatprep.subr.bf16.mxu0 0
    %91 = vmatpush1.bf16.msra.mxu0 %v71
    %92 = vmatprep.subr.bf16.mxu0 0
    %93 = vmatpush1.bf16.msra.mxu0 %v72
    %94 = vmatprep.subr.bf16.mxu0 0
    %95 = vmatpush1.bf16.msra.mxu0 %v73
    %96 = vmatprep.subr.bf16.mxu0 0
    %97 = vmatpush1.bf16.msra.mxu0 %v74
    %98 = vmatprep.subr.bf16.mxu0 0
    %99 = vmatpush1.bf16.msra.mxu0 %v75
    %100 = vmatprep.subr.bf16.mxu0 0
    %101 = vmatpush1.bf16.msra.mxu0 0
    %102 = vmatprep.subr.bf16.mxu0 0
    %103 = vmatpush1.bf16.msra.mxu0 0
    %104 = vmatprep.subr.bf16.mxu0 0
    %105 = vmatpush1.bf16.msra.mxu0 0
    %106 = vmatprep.subr.bf16.mxu0 0
    %107 = vmatpush1.bf16.msra.mxu0 0
    %108 = vmatprep.subr.bf16.mxu0 0
    %109 = vmatpush1.bf16.msra.mxu0 0
    %110 = vmatprep.subr.bf16.mxu0 0
    %111 = vmatpush1.bf16.msra.mxu0 0
    %112 = vmatprep.subr.bf16.mxu0 0
    %113 = vmatpush1.bf16.msra.mxu0 0
    %114 = vmatprep.subr.bf16.mxu0 0
    %115 = vmatpush1.bf16.msra.mxu0 0
    %116 = vmatprep.mubr.bf16.mxu0 0
    %117 = vmatmul.mubr.bf16.gmra.mrb[0].mxu0 %v19
    %v118 = vpop.f32.mrb[0].mxu0
    %v119 = vadd.f32 0.0, %v118
    %v120 = vpop.f32.mrb[0].mxu0
    %v121 = vpop.f32.mrb[0].mxu0
    %v122 = vpop.f32.mrb[0].mxu0
    %123 = vdwg.mxu0
    %v124 = vadd.f32 %v18, %v119
    %125 = vst [vmem:[#allocation2] sm:$0xff] %v124
    // Predicated region
    $region14: #{mlp_forward.1} parent=1 // pred_check
      %p126 = pneg %p13
    $region15: #{mlp_forward.1} parent=1 // pred_check_branch
      %128 = sbr.rel (%p126) target = $region17
    $region16: #{mlp_forward.1} parent=1 // pred_region
      %v129 = vld [vmem:[#allocation2] sm:$0xff]
      %130 = vst [vmem:[#allocation3] sm:$0xff] %v129
    $region17: #{mlp_forward.1} parent=1 // pred_fallthru
      _
    // Predicated region
    $region18: #{mlp_forward.1} parent=1 // pred_check
      _
    $region19: #{mlp_forward.1} parent=1 // pred_check_branch
      %132 = sbr.rel (0) target = $region21
    $region20: #{mlp_forward.1} parent=1 // pred_region
      %s134 = ssub.s32 128, 128
      %135 = vsyncadd [#allocation4], %s134
      %s137 = sshll.u32 [#allocation3], 4
      %s138 = int_to_ptr.vmem [resolvable:$true] %s137
      %140 = dma.vmem_to_hbm [thread:$0]  %s138, 128, %s2, [#allocation4]
    $region21: #{mlp_forward.1} parent=1 // pred_fallthru
      _
    // Predicated region
    $region22: #{mlp_forward.1} parent=1 // pred_check
      _
    $region23: #{mlp_forward.1} parent=1 // pred_check_branch
      %142 = sbr.rel (0) target = $region25
    $region24: #{mlp_forward.1} parent=1 // pred_region
      %143 = dma.done [#allocation4], 128
    $region25: #{mlp_forward.1} parent=1 // pred_fallthru
      _
    %144 = vsyncpa [#allocation4], 1

</llo_original>
